<compile_context>
chip_gen: v6e
topology: v6e:2x2x1
jax: 0.10.0
libtpu: 0.0.40
codegen_flags: <defaults>
</compile_context>

<pallas_src>
import math

import jax
import jax.numpy as jnp
from jax.experimental import pallas as pl
from jax.experimental.pallas import tpu as pltpu

LANES = 128
TARGET_BLOCK_ROWS = 2048   # (2048, 128) f32 block = 1 MiB; sweepable
NUM_SPLITS = 2             # leading "parallel" axis for v7x megacore
GAMMA = 2                  # FocalLoss default
_LN2 = math.log(2.0)
_PAD_ELEM_LOSS = (1.0 + 0.25) * _LN2   # bce(0,0) + focal(0,0) per padded zero


def _loss_kernel(x_ref, t_ref, acc_ref):
    # acc_ref: (1, 8, 128) f32 output block, resident across the "arbitrary"
    # grid axis (its block index depends only on the parallel axis).
    @pl.when(pl.program_id(1) == 0)
    def _():
        acc_ref[...] = jnp.zeros_like(acc_ref)

    x = x_ref[...].astype(jnp.float32)
    t = t_ref[...].astype(jnp.float32)

    # Shared transcendental: e = exp(-|x|)
    e = jnp.exp(-jnp.abs(x))

    # BCEWithLogitsLoss (stable form): max(x,0) - x*t + log1p(exp(-|x|))
    bce = jnp.maximum(x, 0.0) - x * t + jnp.log1p(e)

    # sigmoid(x) from the same exp:  s = 1/(1+e) = sigmoid(|x|)
    s = 1.0 / (1.0 + e)
    p = jnp.where(x >= 0.0, s, 1.0 - s)

    # FocalLoss, gamma=2:  -(1-pt)^2 * log(pt)   (integer square, no pow)
    pt = p * t + (1.0 - p) * (1.0 - t)
    q = 1.0 - pt
    focal = -(q * q) * jnp.log(pt)

    # Both means share the same denominator -> accumulate one combined value.
    elem = bce + focal                                  # (BLOCK_ROWS, 128)
    partial = jnp.sum(elem.reshape(-1, 8, LANES), axis=0)   # VPU adds -> (8,128)
    acc_ref[...] += partial[None, :, :]


def loss_wrapper(y_pred, target):
    """BCEWithLogitsLoss().mean() + FocalLoss(gamma=2).mean() (LossWrapper fwd)."""
    assert y_pred.shape == target.shape, (
        f"y_pred size ({y_pred.shape}) must be the same as target size ({target.shape})"
    )
    n = y_pred.size

    x = y_pred.reshape(-1)
    t = target.reshape(-1)
    if not jnp.issubdtype(x.dtype, jnp.floating):
        x = x.astype(jnp.float32)
    if not jnp.issubdtype(t.dtype, jnp.floating):
        t = t.astype(jnp.float32)
    # NOTE: no upcast here for bf16/f16 inputs -- the kernel upcasts in VMEM.

    rows = pl.cdiv(n, LANES)
    block_rows = min(TARGET_BLOCK_ROWS, pl.cdiv(rows, 8) * 8)   # multiple of 8
    tiles = pl.cdiv(rows, block_rows)
    # Only split across cores when it costs no extra (fully padded) tiles.
    splits = NUM_SPLITS if (tiles >= NUM_SPLITS and tiles % NUM_SPLITS == 0) else 1
    tiles_per_split = tiles // splits

    padded_rows = splits * tiles_per_split * block_rows
    pad = padded_rows * LANES - n
    if pad:
        x = jnp.pad(x, (0, pad))
        t = jnp.pad(t, (0, pad))
    x2 = x.reshape(padded_rows, LANES)
    t2 = t.reshape(padded_rows, LANES)

    in_map = lambda p, i: (p * tiles_per_split + i, 0)
    partial = pl.pallas_call(
        _loss_kernel,
        out_shape=jax.ShapeDtypeStruct((splits, 8, LANES), jnp.float32),
        grid=(splits, tiles_per_split),
        in_specs=[
            pl.BlockSpec((block_rows, LANES), in_map),
            pl.BlockSpec((block_rows, LANES), in_map),
        ],
        out_specs=pl.BlockSpec((1, 8, LANES), lambda p, i: (p, 0, 0)),
        compiler_params=pltpu.CompilerParams(
            dimension_semantics=("parallel", "arbitrary"),
            vmem_limit_bytes=48 * 1024 * 1024,
        ),
    )(x2, t2)

    total = jnp.sum(partial, dtype=jnp.float32)
    # Analytic correction for the zero-padded elements (x=0, t=0).
    total = total - jnp.float32(pad) * jnp.float32(_PAD_ELEM_LOSS)
    return total / jnp.float32(n)


def _reference(y_pred, target):
    x = y_pred.astype(jnp.float32)
    t = target.astype(jnp.float32)
    bce = jnp.maximum(x, 0.0) - x * t + jnp.log1p(jnp.exp(-jnp.abs(x)))
    p = jax.nn.sigmoid(x)
    pt = p * t + (1.0 - p) * (1.0 - t)
    focal = -((1.0 - pt) ** GAMMA) * jnp.log(pt)
    return bce.mean() + focal.mean()


if __name__ == "__main__":
    key = jax.random.PRNGKey(0)

    # 1) Small NCHW case, exactly tile-aligned (no padding).
    k1, k2 = jax.random.split(key)
    y_pred = jax.random.normal(k1, (2, 4, 16, 16), dtype=jnp.float32)
    target = jax.random.uniform(k2, (2, 4, 16, 16), dtype=jnp.float32)
    loss = loss_wrapper(y_pred, target)
    jax.block_until_ready(loss)
    ref = _reference(y_pred, target)
    assert jnp.allclose(loss, ref, rtol=1e-5, atol=1e-5), (loss, ref)

    # 2) Awkward shape -> exercises the analytic zero-padding correction.
    k3, k4 = jax.random.split(k2)
    yp2 = jax.random.normal(k3, (3, 5, 37, 29), dtype=jnp.float32)
    tg2 = jax.random.uniform(k4, (3, 5, 37, 29), dtype=jnp.float32)
    loss2 = loss_wrapper(yp2, tg2)
    jax.block_until_ready(loss2)
    ref2 = _reference(yp2, tg2)
    assert jnp.allclose(loss2, ref2, rtol=1e-4, atol=1e-5), (loss2, ref2)

    # 3) Larger bf16 case -> exercises in-kernel upcast and the 2-way split.
    k5, k6 = jax.random.split(k4)
    yp3 = jax.random.normal(k5, (4, 8, 128, 128), dtype=jnp.bfloat16)
    tg3 = jax.random.uniform(k6, (4, 8, 128, 128), dtype=jnp.bfloat16)
    loss3 = loss_wrapper(yp3, tg3)
    jax.block_until_ready(loss3)
    ref3 = _reference(yp3, tg3)
    assert jnp.allclose(loss3, ref3, rtol=1e-4, atol=1e-5), (loss3, ref3)

    print("KERNEL_OK")
</pallas_src>

<mosaic_0001>
module attributes {stable_mosaic.version = 11 : i64} {
  func.func @_loss_kernel(%arg0: i32, %arg1: i32, %arg2: memref<16x128xf32, #tpu.memory_space<vmem>>, %arg3: memref<16x128xf32, #tpu.memory_space<vmem>>, %arg4: memref<1x8x128xf32, #tpu.memory_space<vmem>>) attributes {dimension_semantics = [#tpu.dimension_semantics<parallel>, #tpu.dimension_semantics<arbitrary>], iteration_bounds = array<i64: 1, 1>, scalar_prefetch = 0 : i64, scratch_operands = 0 : i64, tpu.core_type = #tpu.core_type<tc>, window_params = [{transform_indices = @transform_0, window_bounds = array<i64: 16, 128>}, {transform_indices = @transform_1, window_bounds = array<i64: 16, 128>}, {transform_indices = @transform_2, window_bounds = array<i64: 1, 8, 128>}]} {
    %c0_i32 = arith.constant 0 : i32
    %0 = arith.cmpi eq, %arg1, %c0_i32 : i32
    %1 = arith.extui %0 : i1 to i32
    %c0_i32_0 = arith.constant 0 : i32
    %2 = arith.cmpi ne, %1, %c0_i32_0 : i32
    scf.if %2 {
      %cst_20 = arith.constant 0.000000e+00 : f32
      %45 = vector.broadcast %cst_20 : f32 to vector<1x8x128xf32>
      %c0_21 = arith.constant 0 : index
      %c0_22 = arith.constant 0 : index
      %c0_23 = arith.constant 0 : index
      %46 = vector.load %arg4[%c0_21, %c0_22, %c0_23] : memref<1x8x128xf32, #tpu.memory_space<vmem>>, vector<1x8x128xf32>
      tpu.vector_store %arg4[%c0_21, %c0_22, %c0_23], %45 {strides = array<i32>} : memref<1x8x128xf32, #tpu.memory_space<vmem>>, vector<1x8x128xf32>,
    } else {
    }
    %c0 = arith.constant 0 : index
    %c0_1 = arith.constant 0 : index
    %3 = vector.load %arg2[%c0, %c0_1] : memref<16x128xf32, #tpu.memory_space<vmem>>, vector<16x128xf32>
    %c0_2 = arith.constant 0 : index
    %c0_3 = arith.constant 0 : index
    %4 = vector.load %arg3[%c0_2, %c0_3] : memref<16x128xf32, #tpu.memory_space<vmem>>, vector<16x128xf32>
    %5 = math.absf %3 : vector<16x128xf32>
    %cst = arith.constant 0.000000e+00 : f32
    %6 = vector.broadcast %cst : f32 to vector<16x128xf32>
    %7 = arith.subf %6, %5 : vector<16x128xf32>
    %8 = math.exp %7 : vector<16x128xf32>
    %cst_4 = arith.constant 0.000000e+00 : f32
    %9 = vector.broadcast %cst_4 : f32 to vector<16x128xf32>
    %10 = arith.maximumf %3, %9 : vector<16x128xf32>
    %11 = arith.mulf %3, %4 : vector<16x128xf32>
    %12 = arith.subf %10, %11 : vector<16x128xf32>
    %13 = math.log1p %8 : vector<16x128xf32>
    %14 = arith.addf %12, %13 : vector<16x128xf32>
    %cst_5 = arith.constant 1.000000e+00 : f32
    %15 = vector.broadcast %cst_5 : f32 to vector<16x128xf32>
    %16 = arith.addf %15, %8 : vector<16x128xf32>
    %cst_6 = arith.constant 1.000000e+00 : f32
    %17 = vector.broadcast %cst_6 : f32 to vector<16x128xf32>
    %18 = arith.divf %17, %16 : vector<16x128xf32>
    %cst_7 = arith.constant 0.000000e+00 : f32
    %19 = vector.broadcast %cst_7 : f32 to vector<16x128xf32>
    %20 = arith.cmpf oge, %3, %19 : vector<16x128xf32>
    %cst_8 = arith.constant 1.000000e+00 : f32
    %21 = vector.broadcast %cst_8 : f32 to vector<16x128xf32>
    %22 = arith.subf %21, %18 : vector<16x128xf32>
    %23 = arith.select %20, %18, %22 : vector<16x128xi1>, vector<16x128xf32>
    %24 = arith.mulf %23, %4 : vector<16x128xf32>
    %cst_9 = arith.constant 1.000000e+00 : f32
    %25 = vector.broadcast %cst_9 : f32 to vector<16x128xf32>
    %26 = arith.subf %25, %23 : vector<16x128xf32>
    %cst_10 = arith.constant 1.000000e+00 : f32
    %27 = vector.broadcast %cst_10 : f32 to vector<16x128xf32>
    %28 = arith.subf %27, %4 : vector<16x128xf32>
    %29 = arith.mulf %26, %28 : vector<16x128xf32>
    %30 = arith.addf %24, %29 : vector<16x128xf32>
    %cst_11 = arith.constant 1.000000e+00 : f32
    %31 = vector.broadcast %cst_11 : f32 to vector<16x128xf32>
    %32 = arith.subf %31, %30 : vector<16x128xf32>
    %33 = arith.mulf %32, %32 : vector<16x128xf32>
    %cst_12 = arith.constant 0.000000e+00 : f32
    %34 = vector.broadcast %cst_12 : f32 to vector<16x128xf32>
    %35 = arith.subf %34, %33 : vector<16x128xf32>
    %36 = math.log %30 : vector<16x128xf32>
    %37 = arith.mulf %35, %36 : vector<16x128xf32>
    %38 = arith.addf %14, %37 : vector<16x128xf32>
    %39 = vector.shape_cast %38 : vector<16x128xf32> to vector<2x8x128xf32>
    %cst_13 = arith.constant dense<0.000000e+00> : vector<8x128xf32>
    %40 = vector.multi_reduction <add>, %39, %cst_13 [0] : vector<2x8x128xf32> to vector<8x128xf32>
    %c0_14 = arith.constant 0 : index
    %c0_15 = arith.constant 0 : index
    %c0_16 = arith.constant 0 : index
    %41 = vector.load %arg4[%c0_14, %c0_15, %c0_16] : memref<1x8x128xf32, #tpu.memory_space<vmem>>, vector<1x8x128xf32>
    %42 = vector.shape_cast %40 : vector<8x128xf32> to vector<1x8x128xf32>
    %43 = arith.addf %41, %42 : vector<1x8x128xf32>
    %c0_17 = arith.constant 0 : index
    %c0_18 = arith.constant 0 : index
    %c0_19 = arith.constant 0 : index
    %44 = vector.load %arg4[%c0_17, %c0_18, %c0_19] : memref<1x8x128xf32, #tpu.memory_space<vmem>>, vector<1x8x128xf32>
    tpu.vector_store %arg4[%c0_17, %c0_18, %c0_19], %43 {strides = array<i32>} : memref<1x8x128xf32, #tpu.memory_space<vmem>>, vector<1x8x128xf32>,
    return
  }
  func.func @transform_0(%arg0: i32, %arg1: i32) -> (i32, i32) {
    %c1_i32 = arith.constant 1 : i32
    %0 = arith.muli %arg0, %c1_i32 : i32
    %1 = arith.addi %0, %arg1 : i32
    %c0_i32 = arith.constant 0 : i32
    %c0_i32_0 = arith.constant 0 : i32
    return %1, %c0_i32 : i32, i32
  }
  func.func @transform_1(%arg0: i32, %arg1: i32) -> (i32, i32) {
    %c1_i32 = arith.constant 1 : i32
    %0 = arith.muli %arg0, %c1_i32 : i32
    %1 = arith.addi %0, %arg1 : i32
    %c0_i32 = arith.constant 0 : i32
    %c0_i32_0 = arith.constant 0 : i32
    return %1, %c0_i32 : i32, i32
  }
  func.func @transform_2(%arg0: i32, %arg1: i32) -> (i32, i32, i32) {
    %c0_i32 = arith.constant 0 : i32
    %c0_i32_0 = arith.constant 0 : i32
    %c0_i32_1 = arith.constant 0 : i32
    return %arg0, %c0_i32, %c0_i32_0 : i32, i32, i32
  }
}

</mosaic_0001>

<llo_original>
// kernel: tpu_custom_call.1
$region0: #{tpu_custom_call.1}
  #allocation0 [shape = 'u32[]', space=smem, size = 0x4, offset = 0x4, fixed_abs, tag = 'smem constant byte address 0x4 - core index']
  #allocation1 [shape = 'u32[144,128]{1,0:T(1,128)}', space=vmem, size = 0x12000, scoped, tag = 'internal scratch']
  %s0 = inlined_call_operand.hbm [shape: f32[16,128], index: 0, kind: input, shape index: {}]
  %s1 = inlined_call_operand.hbm [shape: f32[16,128], index: 1, kind: input, shape index: {}]
  %s2 = inlined_call_operand.hbm [shape: f32[1,8,128], index: 2, kind: output, shape index: {}]
  %s3 = sld [smem:[#allocation0]]
  $region30: #{tpu_custom_call.1} parent=0
    _
  %s5 = ssub.s32 1, %s3
  %s6 = scalar_select 0, %s5, %s3
  $region1: #{tpu_custom_call.1} parent=0
    #allocation2 [shape = 'u8[8192]{0}', space=vmem, size = 0x2000, scoped, tag = 'input window, operand 0, single buffered']
    #allocation3 [shape = 's32[1]{0}', space=sflag, size = 0x4, scoped, tag = 'scoped memory for tpu_custom_call.1']
    #allocation4 [shape = 's32[1]{0}', space=sflag, size = 0x4, scoped, tag = 'scoped memory for tpu_custom_call.1']
    #allocation5 [shape = 'u8[8192]{0}', space=vmem, size = 0x2000, scoped, tag = 'input window, operand 1, single buffered']
    #allocation6 [shape = 's32[1]{0}', space=sflag, size = 0x4, scoped, tag = 'scoped memory for tpu_custom_call.1']
    #allocation7 [shape = 'u8[4096]{0}', space=vmem, size = 0x1000, scoped, tag = 'output window, operand 0, single buffered']
    %7 = vsyncpa [#allocation3], 0
    %8 = vsyncpa [#allocation6], 0
    %9 = vsyncpa [#allocation4], 0
    // Predicated region
    $region2: #{tpu_custom_call.1} parent=1 // pred_check
      _
    $region3: #{tpu_custom_call.1} parent=1 // pred_check_branch
      %11 = sbr.rel (0) target = $region5
    $region4: #{tpu_custom_call.1} parent=1 // pred_region
      %s12 = sadd.s32 0, 0
      %s13 = smul.u32 2, %s12
      %s15 = ssub.s32 256, 256
      %16 = vsyncadd [#allocation3], %s15
      %s17 = smul.addr %s13, 128
      %s18 = scalar_lea.hbm %s0, %s17
      %s19 = sshll.u32 [#allocation2], 4
      %s20 = int_to_ptr.vmem [resolvable:$true] %s19
      %25 = dma.hbm_to_vmem [thread:$0]  %s18, 256, %s20, [#allocation3], 128, 128, 8
    $region5: #{tpu_custom_call.1} parent=1 // pred_fallthru
      _
    // Predicated region
    $region6: #{tpu_custom_call.1} parent=1 // pred_check
      _
    $region7: #{tpu_custom_call.1} parent=1 // pred_check_branch
      %27 = sbr.rel (0) target = $region9
    $region8: #{tpu_custom_call.1} parent=1 // pred_region
      %s28 = sadd.s32 0, 0
      %s29 = smul.u32 2, %s28
      %s31 = ssub.s32 256, 256
      %32 = vsyncadd [#allocation6], %s31
      %s33 = smul.addr %s29, 128
      %s34 = scalar_lea.hbm %s1, %s33
      %s35 = sshll.u32 [#allocation5], 4
      %s36 = int_to_ptr.vmem [resolvable:$true] %s35
      %41 = dma.hbm_to_vmem [thread:$0]  %s34, 256, %s36, [#allocation6], 128, 128, 8
    $region9: #{tpu_custom_call.1} parent=1 // pred_fallthru
      _
    // Predicated region
    $region10: #{tpu_custom_call.1} parent=1 // pred_check
      _
    $region11: #{tpu_custom_call.1} parent=1 // pred_check_branch
      %43 = sbr.rel (0) target = $region13
    $region12: #{tpu_custom_call.1} parent=1 // pred_region
      %44 = dma.done [#allocation3], 256
    $region13: #{tpu_custom_call.1} parent=1 // pred_fallthru
      _
    // Predicated region
    $region14: #{tpu_custom_call.1} parent=1 // pred_check
      _
    $region15: #{tpu_custom_call.1} parent=1 // pred_check_branch
      %46 = sbr.rel (0) target = $region17
    $region16: #{tpu_custom_call.1} parent=1 // pred_region
      %47 = dma.done [#allocation6], 256
    $region17: #{tpu_custom_call.1} parent=1 // pred_fallthru
      _
    %s48 = sadd.s32 0, 0
    %s49 = smul.u32 2, %s48
    %s50 = sadd.s32 0, 0
    %s51 = smul.u32 2, %s50
    %p52 = scmp.eq.s32.totalorder 0, 0
    // Predicated region
    $region18: #{tpu_custom_call.1} parent=1 // pred_check
      %p53 = pneg %p52
    $region19: #{tpu_custom_call.1} parent=1 // pred_check_branch
      %55 = sbr.rel (%p53) target = $region21
    $region20: #{tpu_custom_call.1} parent=1 // pred_region
      %56 = vst [vmem:[#allocation7] sm:$0xff] 0.0
    $region21: #{tpu_custom_call.1} parent=1 // pred_fallthru
      _
    %v57 = vld [vmem:[#allocation2] sm:$0xff]
    %v58 = vld [vmem:[#allocation2 + $0x8] sm:$0xff]
    %v59 = vld [vmem:[#allocation5] sm:$0xff]
    %v60 = vld [vmem:[#allocation5 + $0x8] sm:$0xff]
    %v61 = vand.u32 2147483647, %v57
    %v62 = vand.u32 2147483647, %v58
    %v63 = vsub.f32 0.0, %v61
    %v64 = vsub.f32 0.0, %v62
    %v65 = vmul.f32 %v63, 1.442695
    %v66 = vpow.pop %v65
    %v67 = vmul.f32 %v64, 1.442695
    %v68 = vpow.pop %v67
    %v69 = vmax.f32 %v57, 0.0
    %v70 = vmax.f32 %v58, 0.0
    %v71 = vmul.f32 %v57, %v59
    %v72 = vmul.f32 %v58, %v60
    %v73 = vsub.f32 %v69, %v71
    %v74 = vsub.f32 %v70, %v72
    %v75 = vadd.f32 %v66, 1.0
    %v76 = vlog2.pop %v75
    %v77 = vmul.f32 %v76, 0.6931472
    %v78 = vmul.f32 -0.5, %v66
    %v79 = vadd.f32 %v78, 1.0
    %v80 = vmul.f32 %v79, %v66
    %v81 = vand.u32 2147483647, %v66
    %vm82 = vcmp.lt.f32.partialorder %v81, 0.0004427343
    %v83 = vsel %vm82, %v80, %v77
    %v84 = vadd.f32 %v68, 1.0
    %v85 = vlog2.pop %v84
    %v86 = vmul.f32 %v85, 0.6931472
    %v87 = vmul.f32 -0.5, %v68
    %v88 = vadd.f32 %v87, 1.0
    %v89 = vmul.f32 %v88, %v68
    %v90 = vand.u32 2147483647, %v68
    %vm91 = vcmp.lt.f32.partialorder %v90, 0.0004427343
    %v92 = vsel %vm91, %v89, %v86
    %v93 = vadd.f32 %v73, %v83
    %v94 = vadd.f32 %v74, %v92
    %v95 = vadd.f32 %v66, 1.0
    %v96 = vadd.f32 %v68, 1.0
    %v97 = vrcp.pop %v95
    %v98 = vmul.f32 1.0, %v97
    %v99 = vrcp.pop %v96
    %v100 = vmul.f32 1.0, %v99
    %vm101 = vcmp.ge.f32.partialorder %v57, 0.0
    %vm102 = vcmp.ge.f32.partialorder %v58, 0.0
    %v103 = vsub.f32 1.0, %v98
    %v104 = vsub.f32 1.0, %v100
    %v105 = vsel %vm101, %v98, %v103
    %v106 = vsel %vm102, %v100, %v104
    %v107 = vmul.f32 %v105, %v59
    %v108 = vmul.f32 %v106, %v60
    %v109 = vsub.f32 1.0, %v105
    %v110 = vsub.f32 1.0, %v106
    %v111 = vsub.f32 1.0, %v59
    %v112 = vsub.f32 1.0, %v60
    %v113 = vmul.f32 %v109, %v111
    %v114 = vmul.f32 %v110, %v112
    %v115 = vadd.f32 %v107, %v113
    %v116 = vadd.f32 %v108, %v114
    %v117 = vsub.f32 1.0, %v115
    %v118 = vsub.f32 1.0, %v116
    %v119 = vmul.f32 %v117, %v117
    %v120 = vmul.f32 %v118, %v118
    %v121 = vsub.f32 0.0, %v119
    %v122 = vsub.f32 0.0, %v120
    %v123 = vlog2.pop %v115
    %v124 = vmul.f32 %v123, 0.6931472
    %v125 = vlog2.pop %v116
    %v126 = vmul.f32 %v125, 0.6931472
    %v127 = vmul.f32 %v121, %v124
    %v128 = vmul.f32 %v122, %v126
    %v129 = vadd.f32 %v93, %v127
    %v130 = vadd.f32 %v94, %v128
    %v131 = vadd.f32 %v129, %v130
    %v132 = vld [vmem:[#allocation7] sm:$0xff]
    %v133 = vadd.f32 %v132, %v131
    %134 = vst [vmem:[#allocation7] sm:$0xff] %v133
    // Predicated region
    $region22: #{tpu_custom_call.1} parent=1 // pred_check
      _
    $region23: #{tpu_custom_call.1} parent=1 // pred_check_branch
      %136 = sbr.rel (0) target = $region25
    $region24: #{tpu_custom_call.1} parent=1 // pred_region
      %s138 = ssub.s32 128, 128
      %139 = vsyncadd [#allocation4], %s138
      %s141 = sshll.u32 [#allocation7], 4
      %s142 = int_to_ptr.vmem [resolvable:$true] %s141
      %144 = dma.vmem_to_hbm [thread:$0]  %s142, 128, %s2, [#allocation4]
    $region25: #{tpu_custom_call.1} parent=1 // pred_fallthru
      _
    // Predicated region
    $region26: #{tpu_custom_call.1} parent=1 // pred_check
      _
    $region27: #{tpu_custom_call.1} parent=1 // pred_check_branch
      %146 = sbr.rel (0) target = $region29
    $region28: #{tpu_custom_call.1} parent=1 // pred_region
      %147 = dma.done [#allocation4], 128
    $region29: #{tpu_custom_call.1} parent=1 // pred_fallthru
      _
    %148 = vsyncpa [#allocation3], 1
    %149 = vsyncpa [#allocation6], 1
    %150 = vsyncpa [#allocation4], 1

</llo_original>
